<compile_context>
chip_gen: v5e
topology: v5e:2x2
jax: 0.10.0
libtpu: 0.0.40
codegen_flags: <defaults>
</compile_context>

<pallas_src>
import functools

import jax
import jax.numpy as jnp
from jax.experimental import pallas as pl
from jax.experimental.pallas import tpu as pltpu


def _mlp_kernel(x_ref, w1_ref, b1_ref, w2_ref, b2_ref, w3_ref, b3_ref, o_ref):
    # x_ref / w*_ref are bf16 (MXU-native); biases are f32; accumulate in f32.
    h = jnp.dot(x_ref[...], w1_ref[...], preferred_element_type=jnp.float32)
    h = jnp.maximum(h + b1_ref[...], 0.0)                      # Linear + ReLU

    h = jnp.dot(h.astype(jnp.bfloat16), w2_ref[...],
                preferred_element_type=jnp.float32) + b2_ref[...]   # Linear

    h = jnp.dot(h.astype(jnp.bfloat16), w3_ref[...],
                preferred_element_type=jnp.float32) + b3_ref[...]   # Linear

    o_ref[...] = h.astype(o_ref.dtype)


def _round_up(x, m):
    return (x + m - 1) // m * m


@functools.partial(jax.jit, static_argnames=("block_b",))
def model_l_forward(x, w1, b1, w2, b2, w3, b3, *, block_b=256):
    """Fused MLP forward.

    x : (B, input_size) f32
    w*: (in_features, out_features) pre-transposed, b*: (1, out_features).
    """
    B, in_size = x.shape
    hidden = w1.shape[1]
    out_size = w3.shape[1]

    # Pad batch to a multiple of block_b and the output features to a full
    # 128-lane vreg (lane-dense stores).  Both pads are sliced off afterwards.
    Bp = _round_up(B, block_b)
    out_p = _round_up(out_size, 128)

    xb = x.astype(jnp.bfloat16)
    if Bp != B:
        xb = jnp.pad(xb, ((0, Bp - B), (0, 0)))

    w1b = w1.astype(jnp.bfloat16)
    w2b = w2.astype(jnp.bfloat16)
    w3b = jnp.pad(w3, ((0, 0), (0, out_p - out_size))).astype(jnp.bfloat16)
    b1f = b1.astype(jnp.float32)
    b2f = b2.astype(jnp.float32)
    b3f = jnp.pad(b3, ((0, 0), (0, out_p - out_size))).astype(jnp.float32)

    grid = (Bp // block_b,)

    # Whole-array, resident-in-VMEM specs: no pipelining / double-buffering for
    # the (constant-index) weights and biases.
    resident = pl.BlockSpec(memory_space=pltpu.MemorySpace.VMEM)

    out = pl.pallas_call(
        _mlp_kernel,
        out_shape=jax.ShapeDtypeStruct((Bp, out_p), jnp.float32),
        grid_spec=pltpu.PrefetchScalarGridSpec(
            num_scalar_prefetch=0,
            grid=grid,
            in_specs=[
                # activations: tile over batch only
                pl.BlockSpec((block_b, in_size), lambda i: (i, 0)),
                # weights / biases: resident, single-buffered
                resident,  # w1
                resident,  # b1
                resident,  # w2
                resident,  # b2
                resident,  # w3 (lane-padded)
                resident,  # b3 (lane-padded)
            ],
            out_specs=pl.BlockSpec((block_b, out_p), lambda i: (i, 0)),
        ),
        compiler_params=pltpu.CompilerParams(
            dimension_semantics=("parallel",),
        ),
    )(xb, w1b, b1f, w2b, b2f, w3b, b3f)

    return out[:B, :out_size]


def _init_linear(key, fan_in, fan_out):
    """nn.Linear-style U(-1/sqrt(fan_in), 1/sqrt(fan_in)) init.

    Weight is returned already transposed to (fan_in, fan_out) for x @ W + b."""
    kw, kb = jax.random.split(key)
    bound = 1.0 / jnp.sqrt(jnp.float32(fan_in))
    w = jax.random.uniform(kw, (fan_in, fan_out), jnp.float32, -bound, bound)
    b = jax.random.uniform(kb, (1, fan_out), jnp.float32, -bound, bound)
    return w, b


def _reference_forward(x, w1, b1, w2, b2, w3, b3):
    h = jnp.maximum(x @ w1 + b1, 0.0)
    h = h @ w2 + b2
    return h @ w3 + b3


if __name__ == "__main__":
    # Feature shapes implied by the module's config:
    #   linear_input_size=32, hidden_size=32, output_size=4.
    # Batch 512 with block_b=256 -> grid of 2 "parallel" steps (both v7x TCs busy),
    # 256-row tiles fill the MXU M dimension on v6e/v7x.
    batch, input_size, hidden_size, output_size = 512, 32, 32, 4
    block_b = 256

    key = jax.random.PRNGKey(0)
    kx, k1, k2, k3 = jax.random.split(key, 4)

    x = jax.random.normal(kx, (batch, input_size), jnp.float32)
    w1, b1 = _init_linear(k1, input_size, hidden_size)
    w2, b2 = _init_linear(k2, hidden_size, hidden_size)
    w3, b3 = _init_linear(k3, hidden_size, output_size)

    out = model_l_forward(x, w1, b1, w2, b2, w3, b3, block_b=block_b)
    out = jax.block_until_ready(out)

    ref = _reference_forward(x, w1, b1, w2, b2, w3, b3)
    assert out.shape == (batch, output_size)
    # bf16 matmuls with f32 accumulation vs pure-f32 reference: loose tolerance.
    assert jnp.allclose(out, ref, atol=5e-2, rtol=5e-2), "mismatch vs reference"

    print("KERNEL_OK")
</pallas_src>

<mosaic_0001>
module attributes {stable_mosaic.version = 11 : i64} {
  func.func @_mlp_kernel(%arg0: i32, %arg1: memref<256x32xbf16, #tpu.memory_space<vmem>>, %arg2: memref<32x32xbf16, #tpu.memory_space<vmem>>, %arg3: memref<1x32xf32, #tpu.memory_space<vmem>>, %arg4: memref<32x32xbf16, #tpu.memory_space<vmem>>, %arg5: memref<1x32xf32, #tpu.memory_space<vmem>>, %arg6: memref<32x128xbf16, #tpu.memory_space<vmem>>, %arg7: memref<1x128xf32, #tpu.memory_space<vmem>>, %arg8: memref<256x128xf32, #tpu.memory_space<vmem>>) attributes {dimension_semantics = [#tpu.dimension_semantics<parallel>], iteration_bounds = array<i64: 2>, scalar_prefetch = 0 : i64, scratch_operands = 0 : i64, tpu.core_type = #tpu.core_type<tc>, window_params = [{transform_indices = @transform_0, window_bounds = array<i64: 256, 32>}, {pipeline_mode = #tpu.pipeline_mode<synchronous>, transform_indices = @transform_1, window_bounds = array<i64: 32, 32>}, {pipeline_mode = #tpu.pipeline_mode<synchronous>, transform_indices = @transform_2, window_bounds = array<i64: 1, 32>}, {pipeline_mode = #tpu.pipeline_mode<synchronous>, transform_indices = @transform_3, window_bounds = array<i64: 32, 32>}, {pipeline_mode = #tpu.pipeline_mode<synchronous>, transform_indices = @transform_4, window_bounds = array<i64: 1, 32>}, {pipeline_mode = #tpu.pipeline_mode<synchronous>, transform_indices = @transform_5, window_bounds = array<i64: 32, 128>}, {pipeline_mode = #tpu.pipeline_mode<synchronous>, transform_indices = @transform_6, window_bounds = array<i64: 1, 128>}, {transform_indices = @transform_7, window_bounds = array<i64: 256, 128>}]} {
    %c0 = arith.constant 0 : index
    %c0_0 = arith.constant 0 : index
    %0 = vector.load %arg1[%c0, %c0_0] : memref<256x32xbf16, #tpu.memory_space<vmem>>, vector<256x32xbf16>
    %c0_1 = arith.constant 0 : index
    %c0_2 = arith.constant 0 : index
    %1 = vector.load %arg2[%c0_1, %c0_2] : memref<32x32xbf16, #tpu.memory_space<vmem>>, vector<32x32xbf16>
    %cst = arith.constant dense<0.000000e+00> : vector<256x32xf32>
    %2 = tpu.matmul %0, %1, %cst {dimension_numbers = #tpu.dot_dimension_numbers<[1], [0], [0], [1], [0, 0, 1, 1], [], []>} : vector<256x32xbf16>, vector<32x32xbf16>, vector<256x32xf32> -> vector<256x32xf32>
    %c0_3 = arith.constant 0 : index
    %c0_4 = arith.constant 0 : index
    %3 = vector.load %arg3[%c0_3, %c0_4] : memref<1x32xf32, #tpu.memory_space<vmem>>, vector<1x32xf32>
    %4 = vector.broadcast %3 : vector<1x32xf32> to vector<256x32xf32>
    %5 = arith.addf %2, %4 : vector<256x32xf32>
    %cst_5 = arith.constant 0.000000e+00 : f32
    %6 = vector.broadcast %cst_5 : f32 to vector<256x32xf32>
    %7 = arith.maximumf %5, %6 : vector<256x32xf32>
    %8 = arith.truncf %7 : vector<256x32xf32> to vector<256x32xbf16>
    %c0_6 = arith.constant 0 : index
    %c0_7 = arith.constant 0 : index
    %9 = vector.load %arg4[%c0_6, %c0_7] : memref<32x32xbf16, #tpu.memory_space<vmem>>, vector<32x32xbf16>
    %cst_8 = arith.constant dense<0.000000e+00> : vector<256x32xf32>
    %10 = tpu.matmul %8, %9, %cst_8 {dimension_numbers = #tpu.dot_dimension_numbers<[1], [0], [0], [1], [0, 0, 1, 1], [], []>} : vector<256x32xbf16>, vector<32x32xbf16>, vector<256x32xf32> -> vector<256x32xf32>
    %c0_9 = arith.constant 0 : index
    %c0_10 = arith.constant 0 : index
    %11 = vector.load %arg5[%c0_9, %c0_10] : memref<1x32xf32, #tpu.memory_space<vmem>>, vector<1x32xf32>
    %12 = vector.broadcast %11 : vector<1x32xf32> to vector<256x32xf32>
    %13 = arith.addf %10, %12 : vector<256x32xf32>
    %14 = arith.truncf %13 : vector<256x32xf32> to vector<256x32xbf16>
    %c0_11 = arith.constant 0 : index
    %c0_12 = arith.constant 0 : index
    %15 = vector.load %arg6[%c0_11, %c0_12] : memref<32x128xbf16, #tpu.memory_space<vmem>>, vector<32x128xbf16>
    %cst_13 = arith.constant dense<0.000000e+00> : vector<256x128xf32>
    %16 = tpu.matmul %14, %15, %cst_13 {dimension_numbers = #tpu.dot_dimension_numbers<[1], [0], [0], [1], [0, 0, 1, 1], [], []>} : vector<256x32xbf16>, vector<32x128xbf16>, vector<256x128xf32> -> vector<256x128xf32>
    %c0_14 = arith.constant 0 : index
    %c0_15 = arith.constant 0 : index
    %17 = vector.load %arg7[%c0_14, %c0_15] : memref<1x128xf32, #tpu.memory_space<vmem>>, vector<1x128xf32>
    %18 = vector.broadcast %17 : vector<1x128xf32> to vector<256x128xf32>
    %19 = arith.addf %16, %18 : vector<256x128xf32>
    %c0_16 = arith.constant 0 : index
    %c0_17 = arith.constant 0 : index
    %20 = vector.load %arg8[%c0_16, %c0_17] : memref<256x128xf32, #tpu.memory_space<vmem>>, vector<256x128xf32>
    tpu.vector_store %arg8[%c0_16, %c0_17], %19 {strides = array<i32>} : memref<256x128xf32, #tpu.memory_space<vmem>>, vector<256x128xf32>,
    return
  }
  func.func @transform_0(%arg0: i32) -> (i32, i32) {
    %c0_i32 = arith.constant 0 : i32
    %c0_i32_0 = arith.constant 0 : i32
    return %arg0, %c0_i32 : i32, i32
  }
  func.func @transform_1(%arg0: i32) -> (i32, i32) {
    %c0_i32 = arith.constant 0 : i32
    %c0_i32_0 = arith.constant 0 : i32
    %c0_i32_1 = arith.constant 0 : i32
    return %c0_i32, %c0_i32_0 : i32, i32
  }
  func.func @transform_2(%arg0: i32) -> (i32, i32) {
    %c0_i32 = arith.constant 0 : i32
    %c0_i32_0 = arith.constant 0 : i32
    %c0_i32_1 = arith.constant 0 : i32
    return %c0_i32, %c0_i32_0 : i32, i32
  }
  func.func @transform_3(%arg0: i32) -> (i32, i32) {
    %c0_i32 = arith.constant 0 : i32
    %c0_i32_0 = arith.constant 0 : i32
    %c0_i32_1 = arith.constant 0 : i32
    return %c0_i32, %c0_i32_0 : i32, i32
  }
  func.func @transform_4(%arg0: i32) -> (i32, i32) {
    %c0_i32 = arith.constant 0 : i32
    %c0_i32_0 = arith.constant 0 : i32
    %c0_i32_1 = arith.constant 0 : i32
    return %c0_i32, %c0_i32_0 : i32, i32
  }
  func.func @transform_5(%arg0: i32) -> (i32, i32) {
    %c0_i32 = arith.constant 0 : i32
    %c0_i32_0 = arith.constant 0 : i32
    %c0_i32_1 = arith.constant 0 : i32
    return %c0_i32, %c0_i32_0 : i32, i32
  }
  func.func @transform_6(%arg0: i32) -> (i32, i32) {
    %c0_i32 = arith.constant 0 : i32
    %c0_i32_0 = arith.constant 0 : i32
    %c0_i32_1 = arith.constant 0 : i32
    return %c0_i32, %c0_i32_0 : i32, i32
  }
  func.func @transform_7(%arg0: i32) -> (i32, i32) {
    %c0_i32 = arith.constant 0 : i32
    %c0_i32_0 = arith.constant 0 : i32
    return %arg0, %c0_i32 : i32, i32
  }
}

</mosaic_0001>

<llo_original>
// kernel: model_l_forward.1
$region0: #{model_l_forward.1}
  #allocation0 [shape = 'u32[]', space=smem, size = 0x4, offset = 0x4, fixed_abs, tag = 'smem constant byte address 0x4 - core index']
  #allocation1 [shape = 'u32[72,128]{1,0:T(1,128)}', space=vmem, size = 0x9000, scoped, tag = 'internal scratch']
  %s0 = inlined_call_operand.vmem [shape: bf16[512,32], index: 0, kind: input, shape index: {}]
  %s1 = inlined_call_operand.vmem [shape: bf16[32,32], index: 1, kind: input, shape index: {}]
  %s2 = inlined_call_operand.vmem [shape: f32[1,32], index: 2, kind: input, shape index: {}]
  %s3 = inlined_call_operand.vmem [shape: bf16[32,32], index: 3, kind: input, shape index: {}]
  %s4 = inlined_call_operand.vmem [shape: f32[1,32], index: 4, kind: input, shape index: {}]
  %s5 = inlined_call_operand.vmem [shape: bf16[32,128], index: 5, kind: input, shape index: {}]
  %s6 = inlined_call_operand.vmem [shape: f32[1,128], index: 6, kind: input, shape index: {}]
  %s7 = inlined_call_operand.vmem [shape: f32[512,128], index: 7, kind: output, shape index: {}]
  %s8 = sld [smem:[#allocation0]]
  $region61: #{model_l_forward.1} parent=0
    _
  %s10 = ssub.s32 1, %s8
  %s11 = scalar_select 0, %s10, %s8
  loop: start=0, step=1, limit=4
  $region2: #{model_l_forward.1} parent=0 // loop_pre_header
    _
  $region3: #{model_l_forward.1} parent=0 // loop_header
    %s13 = sphi 0, %s17
    %p14 = scmp.ge.s32.totalorder %s13, 4
    %s23 = sphi 0, %s25
    %s26 = sphi 0, %s23
    %s27 = sphi 0, %s26
    %s43 = sphi 0, %s27
    %s47 = sphi 0, %s47
    %s49 = sphi 0, %s47
    %s50 = sphi 0, %s49
    %s64 = sphi 0, %s50
    %s68 = sphi 0, %s68
    %s70 = sphi 0, %s68
    %s71 = sphi 0, %s70
    %s85 = sphi 0, %s71
    %s89 = sphi 0, %s89
    %s91 = sphi 0, %s89
    %s92 = sphi 0, %s91
    %s106 = sphi 0, %s92
    %s110 = sphi 0, %s110
    %s112 = sphi 0, %s110
    %s113 = sphi 0, %s112
    %s127 = sphi 0, %s113
    %s131 = sphi 0, %s131
    %s133 = sphi 0, %s131
    %s134 = sphi 0, %s133
    %s148 = sphi 0, %s134
    %s152 = sphi 0, %s152
    %s154 = sphi 0, %s152
    %s155 = sphi 0, %s154
    %s169 = sphi 0, %s155
    %s175 = sphi 0, %s177
    %s178 = sphi 0, %s175
    %s179 = sphi 0, %s178
    %s195 = sphi 0, %s179
  $region4: #{model_l_forward.1} parent=0 // loop_header_branch
    %16 = sbr.rel (%p14) target = $region8
  $region5: #{model_l_forward.1} parent=0 // loop_body
    %s18 = ssub.s32 %s13, 1
    %s19 = ssub.s32 %s13, 2
    %s20 = sadd.s32 %s13, 1
    %s21 = ssub.s32 %s13, %s20
    %p22 = scmp.eq.s32.totalorder %s21, 0
    %s24 = sadd.s32 %s23, 1
    %s25 = scalar_select %p22, %s23, %s24
    %p28 = pneg %p22
    %p29 = scmp.eq.s32.totalorder %s13, 1
    %p30 = por %p28, %p29
    %p31 = scmp.ne.s32.totalorder %s23, %s26
    %p32 = scmp.eq.s32.totalorder %s13, 0
    %p33 = por %p31, %p32
    %p34 = scmp.ne.s32.totalorder %s23, %s26
    %p35 = scmp.eq.s32.totalorder %s18, 1
    %p36 = por %p34, %p35
    %p37 = scmp.ne.s32.totalorder %s26, %s27
    %p38 = scmp.eq.s32.totalorder %s18, 0
    %p39 = por %p37, %p38
    %p40 = scmp.ne.s32.totalorder %s26, %s27
    %p41 = scmp.eq.s32.totalorder %s19, 1
    %p42 = por %p40, %p41
    %p44 = scmp.ne.s32.totalorder %s27, %s43
    %p45 = scmp.eq.s32.totalorder %s19, 0
    %p46 = por %p44, %p45
    %s48 = sadd.s32 %s47, 1
    %p51 = scmp.eq.s32.totalorder %s13, 1
    %p52 = scmp.ne.s32.totalorder %s47, %s49
    %p53 = scmp.eq.s32.totalorder %s13, 0
    %p54 = por %p52, %p53
    %p55 = scmp.ne.s32.totalorder %s47, %s49
    %p56 = scmp.eq.s32.totalorder %s18, 1
    %p57 = por %p55, %p56
    %p58 = scmp.ne.s32.totalorder %s49, %s50
    %p59 = scmp.eq.s32.totalorder %s18, 0
    %p60 = por %p58, %p59
    %p61 = scmp.ne.s32.totalorder %s49, %s50
    %p62 = scmp.eq.s32.totalorder %s19, 1
    %p63 = por %p61, %p62
    %p65 = scmp.ne.s32.totalorder %s50, %s64
    %p66 = scmp.eq.s32.totalorder %s19, 0
    %p67 = por %p65, %p66
    %s69 = sadd.s32 %s68, 1
    %p72 = scmp.eq.s32.totalorder %s13, 1
    %p73 = scmp.ne.s32.totalorder %s68, %s70
    %p74 = scmp.eq.s32.totalorder %s13, 0
    %p75 = por %p73, %p74
    %p76 = scmp.ne.s32.totalorder %s68, %s70
    %p77 = scmp.eq.s32.totalorder %s18, 1
    %p78 = por %p76, %p77
    %p79 = scmp.ne.s32.totalorder %s70, %s71
    %p80 = scmp.eq.s32.totalorder %s18, 0
    %p81 = por %p79, %p80
    %p82 = scmp.ne.s32.totalorder %s70, %s71
    %p83 = scmp.eq.s32.totalorder %s19, 1
    %p84 = por %p82, %p83
    %p86 = scmp.ne.s32.totalorder %s71, %s85
    %p87 = scmp.eq.s32.totalorder %s19, 0
    %p88 = por %p86, %p87
    %s90 = sadd.s32 %s89, 1
    %p93 = scmp.eq.s32.totalorder %s13, 1
    %p94 = scmp.ne.s32.totalorder %s89, %s91
    %p95 = scmp.eq.s32.totalorder %s13, 0
    %p96 = por %p94, %p95
    %p97 = scmp.ne.s32.totalorder %s89, %s91
    %p98 = scmp.eq.s32.totalorder %s18, 1
    %p99 = por %p97, %p98
    %p100 = scmp.ne.s32.totalorder %s91, %s92
    %p101 = scmp.eq.s32.totalorder %s18, 0
    %p102 = por %p100, %p101
    %p103 = scmp.ne.s32.totalorder %s91, %s92
    %p104 = scmp.eq.s32.totalorder %s19, 1
    %p105 = por %p103, %p104
    %p107 = scmp.ne.s32.totalorder %s92, %s106
    %p108 = scmp.eq.s32.totalorder %s19, 0
    %p109 = por %p107, %p108
    %s111 = sadd.s32 %s110, 1
    %p114 = scmp.eq.s32.totalorder %s13, 1
    %p115 = scmp.ne.s32.totalorder %s110, %s112
    %p116 = scmp.eq.s32.totalorder %s13, 0
    %p117 = por %p115, %p116
    %p118 = scmp.ne.s32.totalorder %s110, %s112
    %p119 = scmp.eq.s32.totalorder %s18, 1
    %p120 = por %p118, %p119
    %p121 = scmp.ne.s32.totalorder %s112, %s113
    %p122 = scmp.eq.s32.totalorder %s18, 0
    %p123 = por %p121, %p122
    %p124 = scmp.ne.s32.totalorder %s112, %s113
    %p125 = scmp.eq.s32.totalorder %s19, 1
    %p126 = por %p124, %p125
    %p128 = scmp.ne.s32.totalorder %s113, %s127
    %p129 = scmp.eq.s32.totalorder %s19, 0
    %p130 = por %p128, %p129
    %s132 = sadd.s32 %s131, 1
    %p135 = scmp.eq.s32.totalorder %s13, 1
    %p136 = scmp.ne.s32.totalorder %s131, %s133
    %p137 = scmp.eq.s32.totalorder %s13, 0
    %p138 = por %p136, %p137
    %p139 = scmp.ne.s32.totalorder %s131, %s133
    %p140 = scmp.eq.s32.totalorder %s18, 1
    %p141 = por %p139, %p140
    %p142 = scmp.ne.s32.totalorder %s133, %s134
    %p143 = scmp.eq.s32.totalorder %s18, 0
    %p144 = por %p142, %p143
    %p145 = scmp.ne.s32.totalorder %s133, %s134
    %p146 = scmp.eq.s32.totalorder %s19, 1
    %p147 = por %p145, %p146
    %p149 = scmp.ne.s32.totalorder %s134, %s148
    %p150 = scmp.eq.s32.totalorder %s19, 0
    %p151 = por %p149, %p150
    %s153 = sadd.s32 %s152, 1
    %p156 = scmp.eq.s32.totalorder %s13, 1
    %p157 = scmp.ne.s32.totalorder %s152, %s154
    %p158 = scmp.eq.s32.totalorder %s13, 0
    %p159 = por %p157, %p158
    %p160 = scmp.ne.s32.totalorder %s152, %s154
    %p161 = scmp.eq.s32.totalorder %s18, 1
    %p162 = por %p160, %p161
    %p163 = scmp.ne.s32.totalorder %s154, %s155
    %p164 = scmp.eq.s32.totalorder %s18, 0
    %p165 = por %p163, %p164
    %p166 = scmp.ne.s32.totalorder %s154, %s155
    %p167 = scmp.eq.s32.totalorder %s19, 1
    %p168 = por %p166, %p167
    %p170 = scmp.ne.s32.totalorder %s155, %s169
    %p171 = scmp.eq.s32.totalorder %s19, 0
    %p172 = por %p170, %p171
    %s173 = ssub.s32 %s13, %s20
    %p174 = scmp.eq.s32.totalorder %s173, 0
    %s176 = sadd.s32 %s175, 1
    %s177 = scalar_select %p174, %s175, %s176
    %p180 = pneg %p174
    %p181 = scmp.eq.s32.totalorder %s13, 1
    %p182 = por %p180, %p181
    %p183 = scmp.ne.s32.totalorder %s175, %s178
    %p184 = scmp.eq.s32.totalorder %s13, 0
    %p185 = por %p183, %p184
    %p186 = scmp.ne.s32.totalorder %s175, %s178
    %p187 = scmp.eq.s32.totalorder %s18, 1
    %p188 = por %p186, %p187
    %p189 = scmp.ne.s32.totalorder %s178, %s179
    %p190 = scmp.eq.s32.totalorder %s18, 0
    %p191 = por %p189, %p190
    %p192 = scmp.ne.s32.totalorder %s178, %s179
    %p193 = scmp.eq.s32.totalorder %s19, 1
    %p194 = por %p192, %p193
    %p196 = scmp.ne.s32.totalorder %s179, %s195
    %p197 = scmp.eq.s32.totalorder %s19, 0
    %p198 = por %p196, %p197
    %p199 = scmp.le.s32.totalorder 1, %s13
    %p200 = scmp.lt.s32.totalorder %s13, 3
    %p201 = pnand %p199, %p200
    %p202 = pneg %p201
    // Predicated region
    $region9: #{model_l_forward.1} parent=5 // pred_check
      _
    $region10: #{model_l_forward.1} parent=5 // pred_check_branch
      %204 = sbr.rel (%p201) target = $region12
    $region11: #{model_l_forward.1} parent=5 // pred_region
      %s205 = ssub.s32 %s13, 1
      // Predicated region
      $region13: #{model_l_forward.1} parent=11 // pred_check
        %p206 = pneg %p60
      $region14: #{model_l_forward.1} parent=11 // pred_check_branch
        %208 = sbr.rel (%p206) target = $region16
      $region15: #{model_l_forward.1} parent=11 // pred_region
        _
      $region16: #{model_l_forward.1} parent=11 // pred_fallthru
        _
      // Predicated region
      $region17: #{model_l_forward.1} parent=11 // pred_check
        %p209 = pneg %p81
      $region18: #{model_l_forward.1} parent=11 // pred_check_branch
        %211 = sbr.rel (%p209) target = $region20
      $region19: #{model_l_forward.1} parent=11 // pred_region
        _
      $region20: #{model_l_forward.1} parent=11 // pred_fallthru
        _
      // Predicated region
      $region21: #{model_l_forward.1} parent=11 // pred_check
        %p212 = pneg %p102
      $region22: #{model_l_forward.1} parent=11 // pred_check_branch
        %214 = sbr.rel (%p212) target = $region24
      $region23: #{model_l_forward.1} parent=11 // pred_region
        _
      $region24: #{model_l_forward.1} parent=11 // pred_fallthru
        _
      // Predicated region
      $region25: #{model_l_forward.1} parent=11 // pred_check
        %p215 = pneg %p123
      $region26: #{model_l_forward.1} parent=11 // pred_check_branch
        %217 = sbr.rel (%p215) target = $region28
      $region27: #{model_l_forward.1} parent=11 // pred_region
        _
      $region28: #{model_l_forward.1} parent=11 // pred_fallthru
        _
      // Predicated region
      $region29: #{model_l_forward.1} parent=11 // pred_check
        %p218 = pneg %p144
      $region30: #{model_l_forward.1} parent=11 // pred_check_branch
        %220 = sbr.rel (%p218) target = $region32
      $region31: #{model_l_forward.1} parent=11 // pred_region
        _
      $region32: #{model_l_forward.1} parent=11 // pred_fallthru
        _
      // Predicated region
      $region33: #{model_l_forward.1} parent=11 // pred_check
        %p221 = pneg %p165
      $region34: #{model_l_forward.1} parent=11 // pred_check_branch
        %223 = sbr.rel (%p221) target = $region36
      $region35: #{model_l_forward.1} parent=11 // pred_region
        _
      $region36: #{model_l_forward.1} parent=11 // pred_fallthru
        _
    $region12: #{model_l_forward.1} parent=5 // pred_fallthru
      _
    %p224 = scmp.lt.s32.totalorder %s13, 2
    // Predicated region
    $region37: #{model_l_forward.1} parent=5 // pred_check
      %p225 = pneg %p224
    $region38: #{model_l_forward.1} parent=5 // pred_check_branch
      %227 = sbr.rel (%p225) target = $region40
    $region39: #{model_l_forward.1} parent=5 // pred_region
      // Predicated region
      $region41: #{model_l_forward.1} parent=39 // pred_check
        %p228 = pneg %p33
      $region42: #{model_l_forward.1} parent=39 // pred_check_branch
        %230 = sbr.rel (%p228) target = $region44
      $region43: #{model_l_forward.1} parent=39 // pred_region
        %s231 = smul.u32 32, %s13
        %p232 = scmp.lt.s32.totalorder %s231, 63
        %s233 = scalar_select %p232, %s231, 63
        %s234 = smul.addr %s233, 4
        %s235 = scalar_lea.vmem %s0, %s234
        %s236 = smul.u32 32, %s13
      $region44: #{model_l_forward.1} parent=39 // pred_fallthru
        _
    $region40: #{model_l_forward.1} parent=5 // pred_fallthru
      _
    %p237 = scmp.le.s32.totalorder 1, %s13
    %p238 = scmp.lt.s32.totalorder %s13, 3
    %p239 = pnand %p237, %p238
    %p240 = pneg %p239
    // Predicated region
    $region45: #{model_l_forward.1} parent=5 // pred_check
      _
    $region46: #{model_l_forward.1} parent=5 // pred_check_branch
      %242 = sbr.rel (%p239) target = $region48
    $region47: #{model_l_forward.1} parent=5 // pred_region
      %s243 = ssub.s32 %s13, 1
      %s244 = smul.u32 32, %s18
      %p245 = scmp.lt.s32.totalorder %s244, 63
      %s246 = scalar_select %p245, %s244, 63
      %s247 = smul.addr %s246, 4
      %s248 = scalar_lea.vmem %s0, %s247
      %p249 = pneg %p39
      %p250 = pneg %p36
      %p251 = pneg %p60
      %p252 = pneg %p57
      %p253 = pneg %p81
      %p254 = pneg %p78
      %p255 = pneg %p102
      %p256 = pneg %p99
      %p257 = pneg %p123
      %p258 = pneg %p120
      %p259 = pneg %p144
      %p260 = pneg %p141
      %p261 = pneg %p165
      %p262 = pneg %p162
      %p263 = pneg %p191
      %p264 = pneg %p188
      %s265 = smul.u32 32, %s18
      %p266 = scmp.lt.s32.totalorder %s265, 63
      %s267 = scalar_select %p266, %s265, 63
      %s268 = smul.addr %s267, 8
      %s269 = scalar_lea.vmem %s7, %s268
      %s270 = smul.u32 32, %s18
      %p271 = scmp.lt.s32.totalorder %s270, 63
      %s272 = scalar_select %p271, %s270, 63
      %s273 = smul.addr %s272, 4
      %s274 = scalar_lea.vmem %s0, %s273
      %s275 = smul.u32 32, %s18
      %s276 = smul.u32 32, %s18
      %p277 = scmp.lt.s32.totalorder %s276, 63
      %s278 = scalar_select %p277, %s276, 63
      %s279 = smul.addr %s278, 8
      %s280 = scalar_lea.vmem %s7, %s279
      %s281 = smul.u32 32, %s18
      %v283 = vld [vmem:[%s274] sm:$0xf]
      %v284 = vld [vmem:[%s274 + $0x4] sm:$0xf]
      %v285 = vld [vmem:[%s274 + $0x8] sm:$0xf]
      %v286 = vld [vmem:[%s274 + $0xc] sm:$0xf]
      %v287 = vld [vmem:[%s274 + $0x10] sm:$0xf]
      %v288 = vld [vmem:[%s274 + $0x14] sm:$0xf]
      %v289 = vld [vmem:[%s274 + $0x18] sm:$0xf]
      %v290 = vld [vmem:[%s274 + $0x1c] sm:$0xf]
      %v291 = vld [vmem:[%s274 + $0x20] sm:$0xf]
      %v292 = vld [vmem:[%s274 + $0x24] sm:$0xf]
      %v293 = vld [vmem:[%s274 + $0x28] sm:$0xf]
      %v294 = vld [vmem:[%s274 + $0x2c] sm:$0xf]
      %v295 = vld [vmem:[%s274 + $0x30] sm:$0xf]
      %v296 = vld [vmem:[%s274 + $0x34] sm:$0xf]
      %v297 = vld [vmem:[%s274 + $0x38] sm:$0xf]
      %v298 = vld [vmem:[%s274 + $0x3c] sm:$0xf]
      %v299 = vld [vmem:[%s274 + $0x40] sm:$0xf]
      %v300 = vld [vmem:[%s274 + $0x44] sm:$0xf]
      %v301 = vld [vmem:[%s274 + $0x48] sm:$0xf]
      %v302 = vld [vmem:[%s274 + $0x4c] sm:$0xf]
      %v303 = vld [vmem:[%s274 + $0x50] sm:$0xf]
      %v304 = vld [vmem:[%s274 + $0x54] sm:$0xf]
      %v305 = vld [vmem:[%s274 + $0x58] sm:$0xf]
      %v306 = vld [vmem:[%s274 + $0x5c] sm:$0xf]
      %v307 = vld [vmem:[%s274 + $0x60] sm:$0xf]
      %v308 = vld [vmem:[%s274 + $0x64] sm:$0xf]
      %v309 = vld [vmem:[%s274 + $0x68] sm:$0xf]
      %v310 = vld [vmem:[%s274 + $0x6c] sm:$0xf]
      %v311 = vld [vmem:[%s274 + $0x70] sm:$0xf]
      %v312 = vld [vmem:[%s274 + $0x74] sm:$0xf]
      %v313 = vld [vmem:[%s274 + $0x78] sm:$0xf]
      %v314 = vld [vmem:[%s274 + $0x7c] sm:$0xf]
      %v315 = vld [vmem:[%s1] sm:$0xf]
      %v316 = vld [vmem:[%s1 + $0x4] sm:$0xf]
      %v317 = vld [vmem:[%s1 + $0x8] sm:$0xf]
      %v318 = vld [vmem:[%s1 + $0xc] sm:$0xf]
      %v319 = vld [vmem:[%s2] sm:$0x1]
      %v321 = vperm.slane %v319, 0
      %v355 = vunpack.c.l.b16 %v283
      %v356 = vunpack.c.l.b16 %v284
      %v357 = vunpack.c.l.b16 %v285
      %v358 = vunpack.c.l.b16 %v286
      %v359 = vunpack.c.l.b16 %v287
      %v360 = vunpack.c.l.b16 %v288
      %v361 = vunpack.c.l.b16 %v289
      %v362 = vunpack.c.l.b16 %v290
      %v363 = vunpack.c.l.b16 %v291
      %v364 = vunpack.c.l.b16 %v292
      %v365 = vunpack.c.l.b16 %v293
      %v366 = vunpack.c.l.b16 %v294
      %v367 = vunpack.c.l.b16 %v295
      %v368 = vunpack.c.l.b16 %v296
      %v369 = vunpack.c.l.b16 %v297
      %v370 = vunpack.c.l.b16 %v298
      %v371 = vunpack.c.l.b16 %v299
      %v372 = vunpack.c.l.b16 %v300
      %v373 = vunpack.c.l.b16 %v301
      %v374 = vunpack.c.l.b16 %v302
      %v375 = vunpack.c.l.b16 %v303
      %v376 = vunpack.c.l.b16 %v304
      %v377 = vunpack.c.l.b16 %v305
      %v378 = vunpack.c.l.b16 %v306
      %v379 = vunpack.c.l.b16 %v307
      %v380 = vunpack.c.l.b16 %v308
      %v381 = vunpack.c.l.b16 %v309
      %v382 = vunpack.c.l.b16 %v310
      %v383 = vunpack.c.l.b16 %v311
      %v384 = vunpack.c.l.b16 %v312
      %v385 = vunpack.c.l.b16 %v313
      %v386 = vunpack.c.l.b16 %v314
      %v387 = vpack.c.b16 %v356, %v355
      %v388 = vpack.c.b16 %v358, %v357
      %v389 = vpack.c.b16 %v360, %v359
      %v390 = vpack.c.b16 %v362, %v361
      %v391 = vpack.c.b16 %v364, %v363
      %v392 = vpack.c.b16 %v366, %v365
      %v393 = vpack.c.b16 %v368, %v367
      %v394 = vpack.c.b16 %v370, %v369
      %v395 = vpack.c.b16 %v372, %v371
      %v396 = vpack.c.b16 %v374, %v373
      %v397 = vpack.c.b16 %v376, %v375
      %v398 = vpack.c.b16 %v378, %v377
      %v399 = vpack.c.b16 %v380, %v379
      %v400 = vpack.c.b16 %v382, %v381
      %v401 = vpack.c.b16 %v384, %v383
      %v402 = vpack.c.b16 %v386, %v385
      %v407 = vunpack.c.l.b16 %v315
      %v408 = vunpack.c.l.b16 %v316
      %v409 = vunpack.c.l.b16 %v317
      %v410 = vunpack.c.l.b16 %v318
      %v411 = vpack.c.b16 %v408, %v407
      %v412 = vpack.c.b16 %v410, %v409
      %vm415 = vcmask 261120
      %v417 = vsel %vm415, %v387, 0
      %v420 = vsel %vm415, %v388, 0
      %v423 = vsel %vm415, %v389, 0
      %v426 = vsel %vm415, %v390, 0
      %v429 = vsel %vm415, %v391, 0
      %v432 = vsel %vm415, %v392, 0
      %v435 = vsel %vm415, %v393, 0
      %v438 = vsel %vm415, %v394, 0
      %v441 = vsel %vm415, %v395, 0
      %v444 = vsel %vm415, %v396, 0
      %v447 = vsel %vm415, %v397, 0
      %v450 = vsel %vm415, %v398, 0
      %v453 = vsel %vm415, %v399, 0
      %v456 = vsel %vm415, %v400, 0
      %v459 = vsel %vm415, %v401, 0
      %v462 = vsel %vm415, %v402, 0
      %464 = vmatpush.bf16.msra.mxu0 0
      %465 = vmatpush.bf16.msra.mxu0 0
      %466 = vmatpush.bf16.msra.mxu0 0
      %467 = vmatpush.bf16.msra.mxu0 0
      %468 = vmatpush.bf16.msra.mxu0 0
      %469 = vmatpush.bf16.msra.mxu0 0
      %470 = vmatpush.bf16.msra.mxu0 %v412
      %471 = vmatpush.bf16.msra.mxu0 %v411
      %472 = vmatmul.bf16.gmra.mxu0 %v417
      %v473 = vpop.f32.mrf.mxu0
      %v474 = vadd.f32 %v321, %v473
      %v475 = vpop.f32.mrf.mxu0
      %v476 = vadd.f32 %v321, %v475
      %477 = vmatmul.bf16.gmra.mxu0 %v420
      %v478 = vpop.f32.mrf.mxu0
      %v479 = vadd.f32 %v321, %v478
      %v480 = vpop.f32.mrf.mxu0
      %v481 = vadd.f32 %v321, %v480
      %482 = vmatmul.bf16.gmra.mxu0 %v423
      %v483 = vpop.f32.mrf.mxu0
      %v484 = vadd.f32 %v321, %v483
      %v485 = vpop.f32.mrf.mxu0
      %v486 = vadd.f32 %v321, %v485
      %487 = vmatmul.bf16.gmra.mxu0 %v426
      %v488 = vpop.f32.mrf.mxu0
      %v489 = vadd.f32 %v321, %v488
      %v490 = vpop.f32.mrf.mxu0
      %v491 = vadd.f32 %v321, %v490
      %492 = vmatmul.bf16.gmra.mxu0 %v429
      %v493 = vpop.f32.mrf.mxu0
      %v494 = vadd.f32 %v321, %v493
      %v495 = vpop.f32.mrf.mxu0
      %v496 = vadd.f32 %v321, %v495
      %497 = vmatmul.bf16.gmra.mxu0 %v432
      %v498 = vpop.f32.mrf.mxu0
      %v499 = vadd.f32 %v321, %v498
      %v500 = vpop.f32.mrf.mxu0
      %v501 = vadd.f32 %v321, %v500
      %502 = vmatmul.bf16.gmra.mxu0 %v435
      %v503 = vpop.f32.mrf.mxu0
      %v504 = vadd.f32 %v321, %v503
      %v505 = vpop.f32.mrf.mxu0
      %v506 = vadd.f32 %v321, %v505
      %507 = vmatmul.bf16.gmra.mxu0 %v438
      %v508 = vpop.f32.mrf.mxu0
      %v509 = vadd.f32 %v321, %v508
      %v510 = vpop.f32.mrf.mxu0
      %v511 = vadd.f32 %v321, %v510
      %512 = vmatmul.bf16.gmra.mxu0 %v441
      %v513 = vpop.f32.mrf.mxu0
      %v514 = vadd.f32 %v321, %v513
      %v515 = vpop.f32.mrf.mxu0
      %v516 = vadd.f32 %v321, %v515
      %517 = vmatmul.bf16.gmra.mxu0 %v444
      %v518 = vpop.f32.mrf.mxu0
      %v519 = vadd.f32 %v321, %v518
      %v520 = vpop.f32.mrf.mxu0
      %v521 = vadd.f32 %v321, %v520
      %522 = vmatmul.bf16.gmra.mxu0 %v447
      %v523 = vpop.f32.mrf.mxu0
      %v524 = vadd.f32 %v321, %v523
      %v525 = vpop.f32.mrf.mxu0
      %v526 = vadd.f32 %v321, %v525
      %527 = vmatmul.bf16.gmra.mxu0 %v450
      %v528 = vpop.f32.mrf.mxu0
      %v529 = vadd.f32 %v321, %v528
      %v530 = vpop.f32.mrf.mxu0
      %v531 = vadd.f32 %v321, %v530
      %532 = vmatmul.bf16.gmra.mxu0 %v453
      %v533 = vpop.f32.mrf.mxu0
      %v534 = vadd.f32 %v321, %v533
      %v535 = vpop.f32.mrf.mxu0
      %v536 = vadd.f32 %v321, %v535
      %537 = vmatmul.bf16.gmra.mxu0 %v456
      %v538 = vpop.f32.mrf.mxu0
      %v539 = vadd.f32 %v321, %v538
      %v540 = vpop.f32.mrf.mxu0
      %v541 = vadd.f32 %v321, %v540
      %542 = vmatmul.bf16.gmra.mxu0 %v459
      %v543 = vpop.f32.mrf.mxu0
      %v544 = vadd.f32 %v321, %v543
      %v545 = vpop.f32.mrf.mxu0
      %v546 = vadd.f32 %v321, %v545
      %547 = vmatmul.bf16.gmra.mxu0 %v462
      %v548 = vpop.f32.mrf.mxu0
      %v549 = vadd.f32 %v321, %v548
      %v550 = vpop.f32.mrf.mxu0
      %v551 = vadd.f32 %v321, %v550
      %552 = vdwg.mxu0
      %v553 = vmax.f32 %v474, 0.0
      %v554 = vmax.f32 %v476, 0.0
      %v555 = vmax.f32 %v479, 0.0
      %v556 = vmax.f32 %v481, 0.0
      %v557 = vmax.f32 %v484, 0.0
      %v558 = vmax.f32 %v486, 0.0
      %v559 = vmax.f32 %v489, 0.0
      %v560 = vmax.f32 %v491, 0.0
      %v561 = vmax.f32 %v494, 0.0
      %v562 = vmax.f32 %v496, 0.0
      %v563 = vmax.f32 %v499, 0.0
      %v564 = vmax.f32 %v501, 0.0
      %v565 = vmax.f32 %v504, 0.0
      %v566 = vmax.f32 %v506, 0.0
      %v567 = vmax.f32 %v509, 0.0
      %v568 = vmax.f32 %v511, 0.0
      %v569 = vmax.f32 %v514, 0.0
      %v570 = vmax.f32 %v516, 0.0
      %v571 = vmax.f32 %v519, 0.0
      %v572 = vmax.f32 %v521, 0.0
      %v573 = vmax.f32 %v524, 0.0
      %v574 = vmax.f32 %v526, 0.0
      %v575 = vmax.f32 %v529, 0.0
      %v576 = vmax.f32 %v531, 0.0
      %v577 = vmax.f32 %v534, 0.0
      %v578 = vmax.f32 %v536, 0.0
      %v579 = vmax.f32 %v539, 0.0
      %v580 = vmax.f32 %v541, 0.0
      %v581 = vmax.f32 %v544, 0.0
      %v582 = vmax.f32 %v546, 0.0
      %v583 = vmax.f32 %v549, 0.0
      %v584 = vmax.f32 %v551, 0.0
      %v585 = vpack.c.bf16 %v554, %v553
      %v586 = vpack.c.bf16 %v556, %v555
      %v587 = vpack.c.bf16 %v558, %v557
      %v588 = vpack.c.bf16 %v560, %v559
      %v589 = vpack.c.bf16 %v562, %v561
      %v590 = vpack.c.bf16 %v564, %v563
      %v591 = vpack.c.bf16 %v566, %v565
      %v592 = vpack.c.bf16 %v568, %v567
      %v593 = vpack.c.bf16 %v570, %v569
      %v594 = vpack.c.bf16 %v572, %v571
      %v595 = vpack.c.bf16 %v574, %v573
      %v596 = vpack.c.bf16 %v576, %v575
      %v597 = vpack.c.bf16 %v578, %v577
      %v598 = vpack.c.bf16 %v580, %v579
      %v599 = vpack.c.bf16 %v582, %v581
      %v600 = vpack.c.bf16 %v584, %v583
      %v601 = vld [vmem:[%s3] sm:$0xf]
      %v602 = vld [vmem:[%s3 + $0x4] sm:$0xf]
      %v603 = vld [vmem:[%s3 + $0x8] sm:$0xf]
      %v604 = vld [vmem:[%s3 + $0xc] sm:$0xf]
      %v605 = vld [vmem:[%s4] sm:$0x1]
      %v607 = vperm.slane %v605, 0
      %v613 = vunpack.c.l.b16 %v601
      %v614 = vunpack.c.l.b16 %v602
      %v615 = vunpack.c.l.b16 %v603
      %v616 = vunpack.c.l.b16 %v604
      %v617 = vpack.c.b16 %v614, %v613
      %v618 = vpack.c.b16 %v616, %v615
      %v622 = vsel %vm415, %v585, 0
      %v625 = vsel %vm415, %v586, 0
      %v628 = vsel %vm415, %v587, 0
      %v631 = vsel %vm415, %v588, 0
      %v634 = vsel %vm415, %v589, 0
      %v637 = vsel %vm415, %v590, 0
      %v640 = vsel %vm415, %v591, 0
      %v643 = vsel %vm415, %v592, 0
      %v646 = vsel %vm415, %v593, 0
      %v649 = vsel %vm415, %v594, 0
      %v652 = vsel %vm415, %v595, 0
      %v655 = vsel %vm415, %v596, 0
      %v658 = vsel %vm415, %v597, 0
      %v661 = vsel %vm415, %v598, 0
      %v664 = vsel %vm415, %v599, 0
      %v667 = vsel %vm415, %v600, 0
      %669 = vmatpush.bf16.msra.mxu0 0
      %670 = vmatpush.bf16.msra.mxu0 0
      %671 = vmatpush.bf16.msra.mxu0 0
      %672 = vmatpush.bf16.msra.mxu0 0
      %673 = vmatpush.bf16.msra.mxu0 0
      %674 = vmatpush.bf16.msra.mxu0 0
      %675 = vmatpush.bf16.msra.mxu0 %v618
      %676 = vmatpush.bf16.msra.mxu0 %v617
      %677 = vmatmul.bf16.gmra.mxu0 %v622
      %v678 = vpop.f32.mrf.mxu0
      %v679 = vadd.f32 %v607, %v678
      %v680 = vpop.f32.mrf.mxu0
      %v681 = vadd.f32 %v607, %v680
      %682 = vmatmul.bf16.gmra.mxu0 %v625
      %v683 = vpop.f32.mrf.mxu0
      %v684 = vadd.f32 %v607, %v683
      %v685 = vpop.f32.mrf.mxu0
      %v686 = vadd.f32 %v607, %v685
      %687 = vmatmul.bf16.gmra.mxu0 %v628
      %v688 = vpop.f32.mrf.mxu0
      %v689 = vadd.f32 %v607, %v688
      %v690 = vpop.f32.mrf.mxu0
      %v691 = vadd.f32 %v607, %v690
      %692 = vmatmul.bf16.gmra.mxu0 %v631
      %v693 = vpop.f32.mrf.mxu0
      %v694 = vadd.f32 %v607, %v693
      %v695 = vpop.f32.mrf.mxu0
      %v696 = vadd.f32 %v607, %v695
      %697 = vmatmul.bf16.gmra.mxu0 %v634
      %v698 = vpop.f32.mrf.mxu0
      %v699 = vadd.f32 %v607, %v698
      %v700 = vpop.f32.mrf.mxu0
      %v701 = vadd.f32 %v607, %v700
      %702 = vmatmul.bf16.gmra.mxu0 %v637
      %v703 = vpop.f32.mrf.mxu0
      %v704 = vadd.f32 %v607, %v703
      %v705 = vpop.f32.mrf.mxu0
      %v706 = vadd.f32 %v607, %v705
      %707 = vmatmul.bf16.gmra.mxu0 %v640
      %v708 = vpop.f32.mrf.mxu0
      %v709 = vadd.f32 %v607, %v708
      %v710 = vpop.f32.mrf.mxu0
      %v711 = vadd.f32 %v607, %v710
      %712 = vmatmul.bf16.gmra.mxu0 %v643
      %v713 = vpop.f32.mrf.mxu0
      %v714 = vadd.f32 %v607, %v713
      %v715 = vpop.f32.mrf.mxu0
      %v716 = vadd.f32 %v607, %v715
      %717 = vmatmul.bf16.gmra.mxu0 %v646
      %v718 = vpop.f32.mrf.mxu0
      %v719 = vadd.f32 %v607, %v718
      %v720 = vpop.f32.mrf.mxu0
      %v721 = vadd.f32 %v607, %v720
      %722 = vmatmul.bf16.gmra.mxu0 %v649
      %v723 = vpop.f32.mrf.mxu0
      %v724 = vadd.f32 %v607, %v723
      %v725 = vpop.f32.mrf.mxu0
      %v726 = vadd.f32 %v607, %v725
      %727 = vmatmul.bf16.gmra.mxu0 %v652
      %v728 = vpop.f32.mrf.mxu0
      %v729 = vadd.f32 %v607, %v728
      %v730 = vpop.f32.mrf.mxu0
      %v731 = vadd.f32 %v607, %v730
      %732 = vmatmul.bf16.gmra.mxu0 %v655
      %v733 = vpop.f32.mrf.mxu0
      %v734 = vadd.f32 %v607, %v733
      %v735 = vpop.f32.mrf.mxu0
      %v736 = vadd.f32 %v607, %v735
      %737 = vmatmul.bf16.gmra.mxu0 %v658
      %v738 = vpop.f32.mrf.mxu0
      %v739 = vadd.f32 %v607, %v738
      %v740 = vpop.f32.mrf.mxu0
      %v741 = vadd.f32 %v607, %v740
      %742 = vmatmul.bf16.gmra.mxu0 %v661
      %v743 = vpop.f32.mrf.mxu0
      %v744 = vadd.f32 %v607, %v743
      %v745 = vpop.f32.mrf.mxu0
      %v746 = vadd.f32 %v607, %v745
      %747 = vmatmul.bf16.gmra.mxu0 %v664
      %v748 = vpop.f32.mrf.mxu0
      %v749 = vadd.f32 %v607, %v748
      %v750 = vpop.f32.mrf.mxu0
      %v751 = vadd.f32 %v607, %v750
      %752 = vmatmul.bf16.gmra.mxu0 %v667
      %v753 = vpop.f32.mrf.mxu0
      %v754 = vadd.f32 %v607, %v753
      %v755 = vpop.f32.mrf.mxu0
      %v756 = vadd.f32 %v607, %v755
      %757 = vdwg.mxu0
      %v758 = vpack.c.bf16 %v681, %v679
      %v759 = vpack.c.bf16 %v686, %v684
      %v760 = vpack.c.bf16 %v691, %v689
      %v761 = vpack.c.bf16 %v696, %v694
      %v762 = vpack.c.bf16 %v701, %v699
      %v763 = vpack.c.bf16 %v706, %v704
      %v764 = vpack.c.bf16 %v711, %v709
      %v765 = vpack.c.bf16 %v716, %v714
      %v766 = vpack.c.bf16 %v721, %v719
      %v767 = vpack.c.bf16 %v726, %v724
      %v768 = vpack.c.bf16 %v731, %v729
      %v769 = vpack.c.bf16 %v736, %v734
      %v770 = vpack.c.bf16 %v741, %v739
      %v771 = vpack.c.bf16 %v746, %v744
      %v772 = vpack.c.bf16 %v751, %v749
      %v773 = vpack.c.bf16 %v756, %v754
      %v774 = vld [vmem:[%s5] sm:$0xf]
      %v775 = vld [vmem:[%s5 + $0x4] sm:$0xf]
      %v776 = vld [vmem:[%s5 + $0x8] sm:$0xf]
      %v777 = vld [vmem:[%s5 + $0xc] sm:$0xf]
      %v778 = vld [vmem:[%s6] sm:$0x1]
      %v780 = vperm.slane %v778, 0
      %v786 = vunpack.c.l.b16 %v774
      %v787 = vunpack.c.l.b16 %v775
      %v788 = vunpack.c.l.b16 %v776
      %v789 = vunpack.c.l.b16 %v777
      %v790 = vpack.c.b16 %v787, %v786
      %v791 = vpack.c.b16 %v789, %v788
      %v795 = vsel %vm415, %v758, 0
      %v798 = vsel %vm415, %v759, 0
      %v801 = vsel %vm415, %v760, 0
      %v804 = vsel %vm415, %v761, 0
      %v807 = vsel %vm415, %v762, 0
      %v810 = vsel %vm415, %v763, 0
      %v813 = vsel %vm415, %v764, 0
      %v816 = vsel %vm415, %v765, 0
      %v819 = vsel %vm415, %v766, 0
      %v822 = vsel %vm415, %v767, 0
      %v825 = vsel %vm415, %v768, 0
      %v828 = vsel %vm415, %v769, 0
      %v831 = vsel %vm415, %v770, 0
      %v834 = vsel %vm415, %v771, 0
      %v837 = vsel %vm415, %v772, 0
      %v840 = vsel %vm415, %v773, 0
      %842 = vmatpush.bf16.msra.mxu0 0
      %843 = vmatpush.bf16.msra.mxu0 0
      %844 = vmatpush.bf16.msra.mxu0 0
      %845 = vmatpush.bf16.msra.mxu0 0
      %846 = vmatpush.bf16.msra.mxu0 0
      %847 = vmatpush.bf16.msra.mxu0 0
      %848 = vmatpush.bf16.msra.mxu0 %v791
      %849 = vmatpush.bf16.msra.mxu0 %v790
      %850 = vmatmul.bf16.gmra.mxu0 %v795
      %v851 = vpop.f32.mrf.mxu0
      %v852 = vadd.f32 %v780, %v851
      %v853 = vpop.f32.mrf.mxu0
      %v854 = vadd.f32 %v780, %v853
      %855 = vmatmul.bf16.gmra.mxu0 %v798
      %v856 = vpop.f32.mrf.mxu0
      %v857 = vadd.f32 %v780, %v856
      %v858 = vpop.f32.mrf.mxu0
      %v859 = vadd.f32 %v780, %v858
      %860 = vmatmul.bf16.gmra.mxu0 %v801
      %v861 = vpop.f32.mrf.mxu0
      %v862 = vadd.f32 %v780, %v861
      %v863 = vpop.f32.mrf.mxu0
      %v864 = vadd.f32 %v780, %v863
      %865 = vmatmul.bf16.gmra.mxu0 %v804
      %v866 = vpop.f32.mrf.mxu0
      %v867 = vadd.f32 %v780, %v866
      %v868 = vpop.f32.mrf.mxu0
      %v869 = vadd.f32 %v780, %v868
      %870 = vmatmul.bf16.gmra.mxu0 %v807
      %v871 = vpop.f32.mrf.mxu0
      %v872 = vadd.f32 %v780, %v871
      %v873 = vpop.f32.mrf.mxu0
      %v874 = vadd.f32 %v780, %v873
      %875 = vmatmul.bf16.gmra.mxu0 %v810
      %v876 = vpop.f32.mrf.mxu0
      %v877 = vadd.f32 %v780, %v876
      %v878 = vpop.f32.mrf.mxu0
      %v879 = vadd.f32 %v780, %v878
      %880 = vmatmul.bf16.gmra.mxu0 %v813
      %v881 = vpop.f32.mrf.mxu0
      %v882 = vadd.f32 %v780, %v881
      %v883 = vpop.f32.mrf.mxu0
      %v884 = vadd.f32 %v780, %v883
      %885 = vmatmul.bf16.gmra.mxu0 %v816
      %v886 = vpop.f32.mrf.mxu0
      %v887 = vadd.f32 %v780, %v886
      %v888 = vpop.f32.mrf.mxu0
      %v889 = vadd.f32 %v780, %v888
      %890 = vmatmul.bf16.gmra.mxu0 %v819
      %v891 = vpop.f32.mrf.mxu0
      %v892 = vadd.f32 %v780, %v891
      %v893 = vpop.f32.mrf.mxu0
      %v894 = vadd.f32 %v780, %v893
      %895 = vmatmul.bf16.gmra.mxu0 %v822
      %v896 = vpop.f32.mrf.mxu0
      %v897 = vadd.f32 %v780, %v896
      %v898 = vpop.f32.mrf.mxu0
      %v899 = vadd.f32 %v780, %v898
      %900 = vmatmul.bf16.gmra.mxu0 %v825
      %v901 = vpop.f32.mrf.mxu0
      %v902 = vadd.f32 %v780, %v901
      %v903 = vpop.f32.mrf.mxu0
      %v904 = vadd.f32 %v780, %v903
      %905 = vmatmul.bf16.gmra.mxu0 %v828
      %v906 = vpop.f32.mrf.mxu0
      %v907 = vadd.f32 %v780, %v906
      %v908 = vpop.f32.mrf.mxu0
      %v909 = vadd.f32 %v780, %v908
      %910 = vmatmul.bf16.gmra.mxu0 %v831
      %v911 = vpop.f32.mrf.mxu0
      %v912 = vadd.f32 %v780, %v911
      %v913 = vpop.f32.mrf.mxu0
      %v914 = vadd.f32 %v780, %v913
      %915 = vmatmul.bf16.gmra.mxu0 %v834
      %v916 = vpop.f32.mrf.mxu0
      %v917 = vadd.f32 %v780, %v916
      %v918 = vpop.f32.mrf.mxu0
      %v919 = vadd.f32 %v780, %v918
      %920 = vmatmul.bf16.gmra.mxu0 %v837
      %v921 = vpop.f32.mrf.mxu0
      %v922 = vadd.f32 %v780, %v921
      %v923 = vpop.f32.mrf.mxu0
      %v924 = vadd.f32 %v780, %v923
      %925 = vmatmul.bf16.gmra.mxu0 %v840
      %v926 = vpop.f32.mrf.mxu0
      %v927 = vadd.f32 %v780, %v926
      %v928 = vpop.f32.mrf.mxu0
      %v929 = vadd.f32 %v780, %v928
      %930 = vdwg.mxu0
      %931 = vst [vmem:[%s280] sm:$0xff] %v852
      %932 = vst [vmem:[%s280 + $0x8] sm:$0xff] %v854
      %933 = vst [vmem:[%s280 + $0x10] sm:$0xff] %v857
      %934 = vst [vmem:[%s280 + $0x18] sm:$0xff] %v859
      %935 = vst [vmem:[%s280 + $0x20] sm:$0xff] %v862
      %936 = vst [vmem:[%s280 + $0x28] sm:$0xff] %v864
      %937 = vst [vmem:[%s280 + $0x30] sm:$0xff] %v867
      %938 = vst [vmem:[%s280 + $0x38] sm:$0xff] %v869
      %939 = vst [vmem:[%s280 + $0x40] sm:$0xff] %v872
      %940 = vst [vmem:[%s280 + $0x48] sm:$0xff] %v874
      %941 = vst [vmem:[%s280 + $0x50] sm:$0xff] %v877
      %942 = vst [vmem:[%s280 + $0x58] sm:$0xff] %v879
      %943 = vst [vmem:[%s280 + $0x60] sm:$0xff] %v882
      %944 = vst [vmem:[%s280 + $0x68] sm:$0xff] %v884
      %945 = vst [vmem:[%s280 + $0x70] sm:$0xff] %v887
      %946 = vst [vmem:[%s280 + $0x78] sm:$0xff] %v889
      %947 = vst [vmem:[%s280 + $0x80] sm:$0xff] %v892
      %948 = vst [vmem:[%s280 + $0x88] sm:$0xff] %v894
      %949 = vst [vmem:[%s280 + $0x90] sm:$0xff] %v897
      %950 = vst [vmem:[%s280 + $0x98] sm:$0xff] %v899
      %951 = vst [vmem:[%s280 + $0xa0] sm:$0xff] %v902
      %952 = vst [vmem:[%s280 + $0xa8] sm:$0xff] %v904
      %953 = vst [vmem:[%s280 + $0xb0] sm:$0xff] %v907
      %954 = vst [vmem:[%s280 + $0xb8] sm:$0xff] %v909
      %955 = vst [vmem:[%s280 + $0xc0] sm:$0xff] %v912
      %956 = vst [vmem:[%s280 + $0xc8] sm:$0xff] %v914
      %957 = vst [vmem:[%s280 + $0xd0] sm:$0xff] %v917
      %958 = vst [vmem:[%s280 + $0xd8] sm:$0xff] %v919
      %959 = vst [vmem:[%s280 + $0xe0] sm:$0xff] %v922
      %960 = vst [vmem:[%s280 + $0xe8] sm:$0xff] %v924
      %961 = vst [vmem:[%s280 + $0xf0] sm:$0xff] %v927
      %962 = vst [vmem:[%s280 + $0xf8] sm:$0xff] %v929
      %s963 = smul.u32 32, %s18
      %p964 = scmp.lt.s32.totalorder %s963, 63
      %s965 = scalar_select %p964, %s963, 63
      %s966 = smul.addr %s965, 8
      %s967 = scalar_lea.vmem %s7, %s966
      // Predicated region
      $region49: #{model_l_forward.1} parent=47 // pred_check
        %p968 = pneg %p188
      $region50: #{model_l_forward.1} parent=47 // pred_check_branch
        %970 = sbr.rel (%p968) target = $region52
      $region51: #{model_l_forward.1} parent=47 // pred_region
        %s971 = smul.u32 32, %s18
      $region52: #{model_l_forward.1} parent=47 // pred_fallthru
        _
    $region48: #{model_l_forward.1} parent=5 // pred_fallthru
      _
    %p972 = scmp.le.s32.totalorder 2, %s13
    // Predicated region
    $region53: #{model_l_forward.1} parent=5 // pred_check
      %p973 = pneg %p972
    $region54: #{model_l_forward.1} parent=5 // pred_check_branch
      %975 = sbr.rel (%p973) target = $region56
    $region55: #{model_l_forward.1} parent=5 // pred_region
      %s976 = ssub.s32 %s13, 2
      // Predicated region
      $region57: #{model_l_forward.1} parent=55 // pred_check
        %p977 = pneg %p194
      $region58: #{model_l_forward.1} parent=55 // pred_check_branch
        %979 = sbr.rel (%p977) target = $region60
      $region59: #{model_l_forward.1} parent=55 // pred_region
        %s980 = smul.u32 32, %s19
        %p981 = scmp.lt.s32.totalorder %s980, 63
        %s982 = scalar_select %p981, %s980, 63
        %s983 = smul.addr %s982, 8
        %s984 = scalar_lea.vmem %s7, %s983
      $region60: #{model_l_forward.1} parent=55 // pred_fallthru
        _
    $region56: #{model_l_forward.1} parent=5 // pred_fallthru
      _
  $region6: #{model_l_forward.1} parent=0 // loop_footer
    %s17 = sadd.s32 1, %s13
  $region7: #{model_l_forward.1} parent=0 // loop_footer_branch
    %12 = sbr.rel target = $region3
  $region8: #{model_l_forward.1} parent=0 // loop_exit
    _

</llo_original>
